<compile_context>
chip_gen: v7x
topology: tpu7x:2x2x1
jax: 0.10.0
libtpu: 0.0.40
codegen_flags: <defaults>
</compile_context>

<pallas_src>
import jax
import jax.numpy as jnp
from jax.experimental import pallas as pl
from jax.experimental.pallas import tpu as pltpu

_LANE = 128
_SUBLANE = 8


def _round_up(n, m):
    return ((n + m - 1) // m) * m


def _make_kernel(use_mxu):
    def _kernel(b2_ref, x5T_ref, w_ref, o_ref):
        # b2_ref:   (1,)      f32  SMEM
        # x5T_ref:  (8, blk)  f32  VMEM  rows 0..3 = x^T, row 4 = emb, 5..7 = 0
        # w_ref:    (Hp, 8)   f32  VMEM  cols 0..4 = W1, 5 = b1, 6 = w2, 7 = 0
        # o_ref:    (1, blk)  f32  VMEM
        x5T = x5T_ref[...]                                   # (8, blk)
        w = w_ref[...]                                       # (Hp, 8)
        b1 = w[:, 5:6]                                       # (Hp, 1)
        w2 = w[:, 6:7]                                       # (Hp, 1)

        if use_mxu:
            # Rows 5..7 of x5T are zero, so cols 5..7 of w (b1 / w2 / pad)
            # contribute nothing to the contraction.
            h = jnp.dot(w, x5T, preferred_element_type=jnp.float32,
                        precision=jax.lax.Precision.HIGHEST) + b1
        else:
            # K = 5 unrolled as VPU outer-product MACs (MXU ~idle at K=5).
            h = b1
            for k in range(5):
                h = h + w[:, k:k + 1] * x5T[k:k + 1, :]      # (Hp,1)*(1,blk)

        # LeakyReLU(negative_slope=0.2)
        h = jnp.where(h >= 0, h, 0.2 * h)

        # Layer 2: VPU multiply + sublane (XLU) reduce, then EUP sigmoid.
        y = jnp.sum(w2 * h, axis=0, keepdims=True) + b2_ref[0]   # (1, blk)
        o_ref[...] = jax.nn.sigmoid(y)

    return _kernel


def discriminator_forward(x, labels, params, *,
                          max_block_lanes=8192,
                          vmem_budget_bytes=8 * 2**20):
    """x: (B, 4) f32, labels: (B,) int in [0, 3). Returns (B, 1) f32."""
    B = x.shape[0]

    # Torch-layout parameters.
    emb_w = params["emb_w"].reshape(3).astype(jnp.float32)   # Embedding(3,1)
    w1 = params["w1"].astype(jnp.float32)                    # (H, 5)  (out, in)
    b1 = params["b1"].astype(jnp.float32)                    # (H,)
    w2 = params["w2"].astype(jnp.float32)                    # (1, H)
    b2 = params["b2"].astype(jnp.float32)                    # (1,)
    H = w1.shape[0]
    Hp = _round_up(H, _SUBLANE)
    use_mxu = H >= 128   # below this the MXU is too poorly utilized at K=5

    # ---- batch block selection: VMEM-budget-aware, TC-aware -----------------
    B128 = _round_up(max(B, 1), _LANE)
    # Per-lane VMEM bytes: x5T block (8 sublanes f32, double-buffered) +
    # output tile (padded to 8 sublanes, double-buffered) + the (Hp, blk) f32
    # hidden intermediate.
    per_lane = 8 * 4 * 2 + 8 * 4 * 2 + Hp * 4
    blk_cap = max(_LANE,
                  min(max_block_lanes,
                      (vmem_budget_bytes // per_lane) // _LANE * _LANE))
    if B128 <= blk_cap:
        if B128 >= 2 * _LANE:
            # Split into >=2 grid steps so both v7x TensorCores get work.
            blk_b = _round_up(B128 // 2, _LANE)
        else:
            blk_b = B128
    else:
        blk_b = blk_cap
    Bp = _round_up(B128, blk_b)
    grid = (Bp // blk_b,)

    # ---- layout pass (single fused transform in the wrapper) ----------------
    # Embedding gather folded into the same pass that transposes / pads x.
    emb = jnp.take(emb_w, labels.astype(jnp.int32), axis=0)          # (B,)
    x5 = jnp.concatenate([x.astype(jnp.float32), emb[:, None]], axis=1)  # (B,5)
    x5T = jnp.zeros((8, Bp), jnp.float32).at[:5, :B].set(x5.T)

    # Packed parameter slab: cols 0..4 = W1, col 5 = b1, col 6 = w2, col 7 = 0.
    # Padded hidden rows are zero so they contribute nothing downstream.
    w_pack = (jnp.zeros((Hp, 8), jnp.float32)
              .at[:H, :5].set(w1)
              .at[:H, 5].set(b1)
              .at[:H, 6].set(w2[0, :]))

    # Explicit scoped-VMEM limit (v5e default is only 16 MiB); generous
    # headroom for double buffering, capped well below v7x's 64 MiB physical.
    need = (2 * 8 * blk_b * 4              # x5T, double-buffered
            + 2 * 8 * blk_b * 4            # out tile, double-buffered
            + 2 * Hp * _LANE * 4           # packed weights (lane-padded)
            + 2 * Hp * blk_b * 4)          # hidden intermediate + slack
    vmem_limit = int(min(48 * 2**20, max(16 * 2**20, 2 * need)))

    cost = pl.CostEstimate(
        flops=Bp * (2 * 5 * Hp + 2 * Hp + 2 * Hp + 1),
        transcendentals=Bp,
        bytes_accessed=4 * (8 * Bp + Bp) + Hp * 8 * 4 + 4,
    )

    out = pl.pallas_call(
        _make_kernel(use_mxu),
        out_shape=jax.ShapeDtypeStruct((1, Bp), jnp.float32),
        grid=grid,
        in_specs=[
            pl.BlockSpec(memory_space=pltpu.MemorySpace.SMEM),   # b2 scalar
            pl.BlockSpec((8, blk_b), lambda i: (0, i)),          # x5^T slab
            pl.BlockSpec((Hp, 8), lambda i: (0, 0)),             # packed params
        ],
        out_specs=pl.BlockSpec((1, blk_b), lambda i: (0, i)),
        compiler_params=pltpu.CompilerParams(
            dimension_semantics=("parallel",),
            vmem_limit_bytes=vmem_limit),
        cost_estimate=cost,
    )(b2, x5T, w_pack)

    return out[:, :B].T                                          # (B, 1)


def init_params(key, hidden_nodes):
    """Deterministic synthetic parameters, in torch's native layouts:
    Linear weight (out, in), Embedding (num, dim)."""
    k_emb, k_w1, k_b1, k_w2, k_b2 = jax.random.split(key, 5)
    in_f = 4 + 1
    return {
        "emb_w": jax.random.normal(k_emb, (3, 1), jnp.float32),
        "w1": jax.random.normal(k_w1, (hidden_nodes, in_f), jnp.float32) * 0.3,
        "b1": jax.random.normal(k_b1, (hidden_nodes,), jnp.float32) * 0.1,
        "w2": jax.random.normal(k_w2, (1, hidden_nodes), jnp.float32) * 0.3,
        "b2": jax.random.normal(k_b2, (1,), jnp.float32) * 0.1,
    }


def _reference_forward(x, labels, p):
    """Pure-JAX reference mirroring the torch module exactly."""
    e = jnp.take(p["emb_w"], labels, axis=0)            # (B, 1)
    xc = jnp.concatenate([x, e], axis=1)                # (B, 5)
    h = jnp.dot(xc, p["w1"].T,
                precision=jax.lax.Precision.HIGHEST) + p["b1"]
    h = jnp.where(h >= 0, h, 0.2 * h)
    y = jnp.dot(h, p["w2"].T,
                precision=jax.lax.Precision.HIGHEST) + p["b2"]
    return jax.nn.sigmoid(y)


if __name__ == "__main__":
    key = jax.random.PRNGKey(0)
    k_p1, k_x1, k_l1, k_p2, k_x2, k_l2 = jax.random.split(key, 6)

    # Case 1: small batch / small hidden -> VPU layer-1 path, single grid step.
    batch, hidden_nodes = 8, 32
    params = init_params(k_p1, hidden_nodes)
    x = jax.random.normal(k_x1, (batch, 4), jnp.float32)
    labels = jax.random.randint(k_l1, (batch,), 0, 3, dtype=jnp.int32)
    out = jax.block_until_ready(discriminator_forward(x, labels, params))
    ref = _reference_forward(x, labels, params)
    assert out.shape == (batch, 1)
    assert jnp.allclose(out, ref, atol=1e-5, rtol=1e-5)

    # Case 2: larger batch / H >= 128 -> MXU layer-1 path, multi-step grid
    # (>= 2 "parallel" steps so both v7x TensorCores are exercised).
    batch2, hidden2 = 384, 256
    params2 = init_params(k_p2, hidden2)
    x2 = jax.random.normal(k_x2, (batch2, 4), jnp.float32)
    labels2 = jax.random.randint(k_l2, (batch2,), 0, 3, dtype=jnp.int32)
    out2 = jax.block_until_ready(discriminator_forward(x2, labels2, params2))
    ref2 = _reference_forward(x2, labels2, params2)
    assert out2.shape == (batch2, 1)
    assert jnp.allclose(out2, ref2, atol=1e-4, rtol=1e-4)

    print("KERNEL_OK")
</pallas_src>

<mosaic_0001>
module attributes {stable_mosaic.version = 11 : i64} {
  func.func @_kernel(%arg0: i32, %arg1: memref<1xf32, #tpu.memory_space<smem>>, %arg2: memref<8x128xf32, #tpu.memory_space<vmem>>, %arg3: memref<32x8xf32, #tpu.memory_space<vmem>>, %arg4: memref<1x128xf32, #tpu.memory_space<vmem>>) attributes {dimension_semantics = [#tpu.dimension_semantics<parallel>], iteration_bounds = array<i64: 1>, scalar_prefetch = 0 : i64, scratch_operands = 0 : i64, tpu.core_type = #tpu.core_type<tc>, window_params = [{transform_indices = @transform_0, window_bounds = array<i64: 1>}, {transform_indices = @transform_1, window_bounds = array<i64: 8, 128>}, {pipeline_mode = #tpu.pipeline_mode<synchronous>, transform_indices = @transform_2, window_bounds = array<i64: 32, 8>}, {transform_indices = @transform_3, window_bounds = array<i64: 1, 128>}]} {
    %c0 = arith.constant 0 : index
    %c0_0 = arith.constant 0 : index
    %0 = vector.load %arg2[%c0, %c0_0] : memref<8x128xf32, #tpu.memory_space<vmem>>, vector<8x128xf32>
    %c0_1 = arith.constant 0 : index
    %c0_2 = arith.constant 0 : index
    %1 = vector.load %arg3[%c0_1, %c0_2] : memref<32x8xf32, #tpu.memory_space<vmem>>, vector<32x8xf32>
    %2 = vector.extract_strided_slice %1 {offsets = [0, 5], sizes = [32, 1], strides = [1, 1]} : vector<32x8xf32> to vector<32x1xf32>
    %3 = vector.extract_strided_slice %1 {offsets = [0, 6], sizes = [32, 1], strides = [1, 1]} : vector<32x8xf32> to vector<32x1xf32>
    %4 = vector.extract_strided_slice %1 {offsets = [0, 0], sizes = [32, 1], strides = [1, 1]} : vector<32x8xf32> to vector<32x1xf32>
    %5 = vector.extract_strided_slice %0 {offsets = [0, 0], sizes = [1, 128], strides = [1, 1]} : vector<8x128xf32> to vector<1x128xf32>
    %6 = vector.broadcast %4 : vector<32x1xf32> to vector<32x128xf32>
    %7 = vector.broadcast %5 : vector<1x128xf32> to vector<32x128xf32>
    %8 = arith.mulf %6, %7 : vector<32x128xf32>
    %9 = vector.broadcast %2 : vector<32x1xf32> to vector<32x128xf32>
    %10 = arith.addf %9, %8 : vector<32x128xf32>
    %11 = vector.extract_strided_slice %1 {offsets = [0, 1], sizes = [32, 1], strides = [1, 1]} : vector<32x8xf32> to vector<32x1xf32>
    %12 = vector.extract_strided_slice %0 {offsets = [1, 0], sizes = [1, 128], strides = [1, 1]} : vector<8x128xf32> to vector<1x128xf32>
    %13 = vector.broadcast %11 : vector<32x1xf32> to vector<32x128xf32>
    %14 = vector.broadcast %12 : vector<1x128xf32> to vector<32x128xf32>
    %15 = arith.mulf %13, %14 : vector<32x128xf32>
    %16 = arith.addf %10, %15 : vector<32x128xf32>
    %17 = vector.extract_strided_slice %1 {offsets = [0, 2], sizes = [32, 1], strides = [1, 1]} : vector<32x8xf32> to vector<32x1xf32>
    %18 = vector.extract_strided_slice %0 {offsets = [2, 0], sizes = [1, 128], strides = [1, 1]} : vector<8x128xf32> to vector<1x128xf32>
    %19 = vector.broadcast %17 : vector<32x1xf32> to vector<32x128xf32>
    %20 = vector.broadcast %18 : vector<1x128xf32> to vector<32x128xf32>
    %21 = arith.mulf %19, %20 : vector<32x128xf32>
    %22 = arith.addf %16, %21 : vector<32x128xf32>
    %23 = vector.extract_strided_slice %1 {offsets = [0, 3], sizes = [32, 1], strides = [1, 1]} : vector<32x8xf32> to vector<32x1xf32>
    %24 = vector.extract_strided_slice %0 {offsets = [3, 0], sizes = [1, 128], strides = [1, 1]} : vector<8x128xf32> to vector<1x128xf32>
    %25 = vector.broadcast %23 : vector<32x1xf32> to vector<32x128xf32>
    %26 = vector.broadcast %24 : vector<1x128xf32> to vector<32x128xf32>
    %27 = arith.mulf %25, %26 : vector<32x128xf32>
    %28 = arith.addf %22, %27 : vector<32x128xf32>
    %29 = vector.extract_strided_slice %1 {offsets = [0, 4], sizes = [32, 1], strides = [1, 1]} : vector<32x8xf32> to vector<32x1xf32>
    %30 = vector.extract_strided_slice %0 {offsets = [4, 0], sizes = [1, 128], strides = [1, 1]} : vector<8x128xf32> to vector<1x128xf32>
    %31 = vector.broadcast %29 : vector<32x1xf32> to vector<32x128xf32>
    %32 = vector.broadcast %30 : vector<1x128xf32> to vector<32x128xf32>
    %33 = arith.mulf %31, %32 : vector<32x128xf32>
    %34 = arith.addf %28, %33 : vector<32x128xf32>
    %cst = arith.constant 0.000000e+00 : f32
    %35 = vector.broadcast %cst : f32 to vector<32x128xf32>
    %36 = arith.cmpf oge, %34, %35 : vector<32x128xf32>
    %cst_3 = arith.constant 2.000000e-01 : f32
    %37 = vector.broadcast %cst_3 : f32 to vector<32x128xf32>
    %38 = arith.mulf %37, %34 : vector<32x128xf32>
    %39 = arith.select %36, %34, %38 : vector<32x128xi1>, vector<32x128xf32>
    %40 = vector.broadcast %3 : vector<32x1xf32> to vector<32x128xf32>
    %41 = arith.mulf %40, %39 : vector<32x128xf32>
    %cst_4 = arith.constant dense<0.000000e+00> : vector<128xf32>
    %42 = vector.multi_reduction <add>, %41, %cst_4 [0] : vector<32x128xf32> to vector<128xf32>
    %43 = vector.shape_cast %42 : vector<128xf32> to vector<1x128xf32>
    %c0_5 = arith.constant 0 : index
    %44 = memref.load %arg1[%c0_5] : memref<1xf32, #tpu.memory_space<smem>>
    %45 = vector.broadcast %44 : f32 to vector<1x128xf32>
    %46 = arith.addf %43, %45 : vector<1x128xf32>
    %47 = arith.negf %46 : vector<1x128xf32>
    %48 = math.exp %47 : vector<1x128xf32>
    %cst_6 = arith.constant 1.000000e+00 : f32
    %49 = vector.broadcast %cst_6 : f32 to vector<1x128xf32>
    %50 = arith.addf %49, %48 : vector<1x128xf32>
    %51 = arith.divf %49, %50 : vector<1x128xf32>
    %c0_7 = arith.constant 0 : index
    %c0_8 = arith.constant 0 : index
    %52 = vector.load %arg4[%c0_7, %c0_8] : memref<1x128xf32, #tpu.memory_space<vmem>>, vector<1x128xf32>
    tpu.vector_store %arg4[%c0_7, %c0_8], %51 {strides = array<i32>} : memref<1x128xf32, #tpu.memory_space<vmem>>, vector<1x128xf32>,
    return
  }
  func.func @transform_0(%arg0: i32) -> i32 {
    %c0_i32 = arith.constant 0 : i32
    %c0_i32_0 = arith.constant 0 : i32
    return %c0_i32 : i32
  }
  func.func @transform_1(%arg0: i32) -> (i32, i32) {
    %c0_i32 = arith.constant 0 : i32
    %c0_i32_0 = arith.constant 0 : i32
    return %c0_i32, %arg0 : i32, i32
  }
  func.func @transform_2(%arg0: i32) -> (i32, i32) {
    %c0_i32 = arith.constant 0 : i32
    %c0_i32_0 = arith.constant 0 : i32
    %c0_i32_1 = arith.constant 0 : i32
    return %c0_i32, %c0_i32_0 : i32, i32
  }
  func.func @transform_3(%arg0: i32) -> (i32, i32) {
    %c0_i32 = arith.constant 0 : i32
    %c0_i32_0 = arith.constant 0 : i32
    return %c0_i32, %arg0 : i32, i32
  }
}

</mosaic_0001>

<llo_original>
// kernel: tpu_custom_call.1
$region0: #{tpu_custom_call.1}
  #allocation0 [shape = 'u32[]', space=smem, size = 0x4, offset = 0x4, fixed_abs, tag = 'smem constant byte address 0x4 - core index']
  #allocation1 [shape = 'u32[144,128]{1,0:T(1,128)}', space=vmem, size = 0x12000, scoped, tag = 'internal scratch']
  #allocation2 [shape = 'f32[1]{0:T(128)S(6)}', space=smem, size = 0x200, scoped, tag = 'scoped memory for tpu_custom_call.1']
  %s0 = inlined_call_operand.<no memory space> [shape: f32[1], index: 0, kind: input, shape index: {}]
  %s1 = inlined_call_operand.vmem [shape: f32[8,128], index: 1, kind: input, shape index: {}]
  %s2 = inlined_call_operand.vmem [shape: f32[32,8], index: 2, kind: input, shape index: {}]
  %s3 = inlined_call_operand.hbm [shape: f32[1,128], index: 3, kind: output, shape index: {}]
  %s4 = sld [smem:[#allocation0]]
  $region22: #{tpu_custom_call.1} parent=0
    _
  %s6 = ssub.s32 1, %s4
  %s7 = scalar_select 0, %s6, %s4
  %8 = sst [smem:[#allocation2]] %s0
  $region1: #{tpu_custom_call.1} parent=0
    #allocation3 [shape = 'u8[512]{0}', space=vmem, size = 0x400, scoped, tag = 'output window, operand 0, single buffered']
    #allocation4 [shape = 's32[1]{0}', space=sflag, size = 0x4, scoped, tag = 'scoped memory for tpu_custom_call.1']
    %9 = vsyncpa [#allocation4], 0
    // Predicated region
    $region2: #{tpu_custom_call.1} parent=1 // pred_check
      _
    $region3: #{tpu_custom_call.1} parent=1 // pred_check_branch
      %11 = sbr.rel (0) target = $region5
    $region4: #{tpu_custom_call.1} parent=1 // pred_region
      _
    $region5: #{tpu_custom_call.1} parent=1 // pred_fallthru
      _
    // Predicated region
    $region6: #{tpu_custom_call.1} parent=1 // pred_check
      _
    $region7: #{tpu_custom_call.1} parent=1 // pred_check_branch
      %13 = sbr.rel (0) target = $region9
    $region8: #{tpu_custom_call.1} parent=1 // pred_region
      _
    $region9: #{tpu_custom_call.1} parent=1 // pred_fallthru
      _
    // Predicated region
    $region10: #{tpu_custom_call.1} parent=1 // pred_check
      _
    $region11: #{tpu_custom_call.1} parent=1 // pred_check_branch
      %15 = sbr.rel (0) target = $region13
    $region12: #{tpu_custom_call.1} parent=1 // pred_region
      _
    $region13: #{tpu_custom_call.1} parent=1 // pred_fallthru
      _
    %v16 = vld [vmem:[%s1] sm:$0xff]
    %v17 = vld [vmem:[%s2] sm:$0xff]
    %v18 = vld [vmem:[%s2 + $0x8] sm:$0xff]
    %v19 = vld [vmem:[%s2 + $0x10] sm:$0xff]
    %v20 = vld [vmem:[%s2 + $0x18] sm:$0xff]
    %22 = vset.pattern.permute.xlu0 0
    %23 = vperm.xlu0 %22, %v17
    %v24 = vpop.permute.xlu0 %23
    %27 = vset.pattern.permute.xlu0 0
    %28 = vperm.xlu0 %27, %v18
    %v29 = vpop.permute.xlu0 %28
    %32 = vset.pattern.permute.xlu0 0
    %33 = vperm.xlu0 %32, %v19
    %v34 = vpop.permute.xlu0 %33
    %37 = vset.pattern.permute.xlu0 0
    %38 = vperm.xlu0 %37, %v20
    %v39 = vpop.permute.xlu0 %38
    %v41 = vlaneseq
    %v42 = vshrl.u32 %v41, 7
    %v43 = vsub.s32 0, %v42
    %v44 = vrot.slane %v16, %v43
    %v45 = vmul.f32 %v24, %v44
    %v46 = vmul.f32 %v29, %v44
    %v47 = vmul.f32 %v34, %v44
    %v48 = vmul.f32 %v39, %v44
    %49 = vset.pattern.permute.xlu0 5
    %50 = vperm.xlu0 %49, %v17
    %v51 = vpop.permute.xlu0 %50
    %53 = vset.pattern.permute.xlu0 5
    %54 = vperm.xlu0 %53, %v18
    %v55 = vpop.permute.xlu0 %54
    %57 = vset.pattern.permute.xlu0 5
    %58 = vperm.xlu0 %57, %v19
    %v59 = vpop.permute.xlu0 %58
    %61 = vset.pattern.permute.xlu0 5
    %62 = vperm.xlu0 %61, %v20
    %v63 = vpop.permute.xlu0 %62
    %v65 = vadd.f32 %v51, %v45
    %v66 = vadd.f32 %v55, %v46
    %v67 = vadd.f32 %v59, %v47
    %v68 = vadd.f32 %v63, %v48
    %69 = vset.pattern.permute.xlu0 1
    %70 = vperm.xlu0 %69, %v17
    %v71 = vpop.permute.xlu0 %70
    %73 = vset.pattern.permute.xlu0 1
    %74 = vperm.xlu0 %73, %v18
    %v75 = vpop.permute.xlu0 %74
    %77 = vset.pattern.permute.xlu0 1
    %78 = vperm.xlu0 %77, %v19
    %v79 = vpop.permute.xlu0 %78
    %81 = vset.pattern.permute.xlu0 1
    %82 = vperm.xlu0 %81, %v20
    %v83 = vpop.permute.xlu0 %82
    %v85 = vlaneseq
    %v86 = vshrl.u32 %v85, 7
    %v87 = vsub.s32 1, %v86
    %v88 = vrot.slane %v16, %v87
    %v89 = vmul.f32 %v71, %v88
    %v90 = vmul.f32 %v75, %v88
    %v91 = vmul.f32 %v79, %v88
    %v92 = vmul.f32 %v83, %v88
    %v93 = vadd.f32 %v65, %v89
    %v94 = vadd.f32 %v66, %v90
    %v95 = vadd.f32 %v67, %v91
    %v96 = vadd.f32 %v68, %v92
    %97 = vset.pattern.permute.xlu0 2
    %98 = vperm.xlu0 %97, %v17
    %v99 = vpop.permute.xlu0 %98
    %101 = vset.pattern.permute.xlu0 2
    %102 = vperm.xlu0 %101, %v18
    %v103 = vpop.permute.xlu0 %102
    %105 = vset.pattern.permute.xlu0 2
    %106 = vperm.xlu0 %105, %v19
    %v107 = vpop.permute.xlu0 %106
    %109 = vset.pattern.permute.xlu0 2
    %110 = vperm.xlu0 %109, %v20
    %v111 = vpop.permute.xlu0 %110
    %v113 = vlaneseq
    %v114 = vshrl.u32 %v113, 7
    %v115 = vsub.s32 2, %v114
    %v116 = vrot.slane %v16, %v115
    %v117 = vmul.f32 %v99, %v116
    %v118 = vmul.f32 %v103, %v116
    %v119 = vmul.f32 %v107, %v116
    %v120 = vmul.f32 %v111, %v116
    %v121 = vadd.f32 %v93, %v117
    %v122 = vadd.f32 %v94, %v118
    %v123 = vadd.f32 %v95, %v119
    %v124 = vadd.f32 %v96, %v120
    %125 = vset.pattern.permute.xlu0 3
    %126 = vperm.xlu0 %125, %v17
    %v127 = vpop.permute.xlu0 %126
    %129 = vset.pattern.permute.xlu0 3
    %130 = vperm.xlu0 %129, %v18
    %v131 = vpop.permute.xlu0 %130
    %133 = vset.pattern.permute.xlu0 3
    %134 = vperm.xlu0 %133, %v19
    %v135 = vpop.permute.xlu0 %134
    %137 = vset.pattern.permute.xlu0 3
    %138 = vperm.xlu0 %137, %v20
    %v139 = vpop.permute.xlu0 %138
    %v141 = vlaneseq
    %v142 = vshrl.u32 %v141, 7
    %v143 = vsub.s32 3, %v142
    %v144 = vrot.slane %v16, %v143
    %v145 = vmul.f32 %v127, %v144
    %v146 = vmul.f32 %v131, %v144
    %v147 = vmul.f32 %v135, %v144
    %v148 = vmul.f32 %v139, %v144
    %v149 = vadd.f32 %v121, %v145
    %v150 = vadd.f32 %v122, %v146
    %v151 = vadd.f32 %v123, %v147
    %v152 = vadd.f32 %v124, %v148
    %153 = vset.pattern.permute.xlu0 4
    %154 = vperm.xlu0 %153, %v17
    %v155 = vpop.permute.xlu0 %154
    %157 = vset.pattern.permute.xlu0 4
    %158 = vperm.xlu0 %157, %v18
    %v159 = vpop.permute.xlu0 %158
    %161 = vset.pattern.permute.xlu0 4
    %162 = vperm.xlu0 %161, %v19
    %v163 = vpop.permute.xlu0 %162
    %165 = vset.pattern.permute.xlu0 4
    %166 = vperm.xlu0 %165, %v20
    %v167 = vpop.permute.xlu0 %166
    %v169 = vlaneseq
    %v170 = vshrl.u32 %v169, 7
    %v171 = vsub.s32 4, %v170
    %v172 = vrot.slane %v16, %v171
    %v173 = vmul.f32 %v155, %v172
    %v174 = vmul.f32 %v159, %v172
    %v175 = vmul.f32 %v163, %v172
    %v176 = vmul.f32 %v167, %v172
    %v177 = vadd.f32 %v149, %v173
    %v178 = vadd.f32 %v150, %v174
    %v179 = vadd.f32 %v151, %v175
    %v180 = vadd.f32 %v152, %v176
    %vm181 = vcmp.ge.f32.partialorder %v177, 0.0
    %vm182 = vcmp.ge.f32.partialorder %v178, 0.0
    %vm183 = vcmp.ge.f32.partialorder %v179, 0.0
    %vm184 = vcmp.ge.f32.partialorder %v180, 0.0
    %v185 = vmul.f32 %v177, 0.2
    %v186 = vmul.f32 %v178, 0.2
    %v187 = vmul.f32 %v179, 0.2
    %v188 = vmul.f32 %v180, 0.2
    %v189 = vsel %vm181, %v177, %v185
    %v190 = vsel %vm182, %v178, %v186
    %v191 = vsel %vm183, %v179, %v187
    %v192 = vsel %vm184, %v180, %v188
    %193 = vset.pattern.permute.xlu0 6
    %194 = vperm.xlu0 %193, %v17
    %v195 = vpop.permute.xlu0 %194
    %197 = vset.pattern.permute.xlu0 6
    %198 = vperm.xlu0 %197, %v18
    %v199 = vpop.permute.xlu0 %198
    %201 = vset.pattern.permute.xlu0 6
    %202 = vperm.xlu0 %201, %v19
    %v203 = vpop.permute.xlu0 %202
    %205 = vset.pattern.permute.xlu0 6
    %206 = vperm.xlu0 %205, %v20
    %v207 = vpop.permute.xlu0 %206
    %v209 = vmul.f32 %v195, %v189
    %v210 = vmul.f32 %v199, %v190
    %v211 = vmul.f32 %v203, %v191
    %v212 = vmul.f32 %v207, %v192
    %v213 = vadd.f32 %v209, %v210
    %v214 = vadd.f32 %v213, %v211
    %v215 = vadd.f32 %v214, %v212
    %v216 = vrot.slane %v215, 4
    %v217 = vadd.f32 %v215, %v216
    %v218 = vrot.slane %v217, 2
    %v219 = vadd.f32 %v217, %v218
    %v220 = vrot.slane %v219, 1
    %v221 = vadd.f32 %v219, %v220
    %s222 = sld [smem:[#allocation2]]
    %v223 = vstv %s222
    %v224 = vadd.f32 %v221, %v223
    %v225 = vxor.u32 %v224, 2147483648
    %v226 = vmul.f32 %v225, 1.442695
    %v227 = vpow.pop %v226
    %v228 = vadd.f32 %v227, 1.0
    %v229 = vrcp.pop %v228
    %v230 = vmul.f32 1.0, %v229
    %231 = vst [vmem:[#allocation3] sm:$0x1] %v230
    // Predicated region
    $region14: #{tpu_custom_call.1} parent=1 // pred_check
      _
    $region15: #{tpu_custom_call.1} parent=1 // pred_check_branch
      %233 = sbr.rel (0) target = $region17
    $region16: #{tpu_custom_call.1} parent=1 // pred_region
      %s235 = ssub.s32 16, 16
      %236 = vsyncadd [#allocation4], %s235
      %s238 = sshll.u32 [#allocation3], 4
      %s239 = int_to_ptr.vmem [resolvable:$true] %s238
      %241 = dma.vmem_to_hbm [thread:$0]  %s239, 16, %s3, [#allocation4]
    $region17: #{tpu_custom_call.1} parent=1 // pred_fallthru
      _
    // Predicated region
    $region18: #{tpu_custom_call.1} parent=1 // pred_check
      _
    $region19: #{tpu_custom_call.1} parent=1 // pred_check_branch
      %243 = sbr.rel (0) target = $region21
    $region20: #{tpu_custom_call.1} parent=1 // pred_region
      %244 = dma.done [#allocation4], 16
    $region21: #{tpu_custom_call.1} parent=1 // pred_fallthru
      _
    %245 = vsyncpa [#allocation4], 1

</llo_original>
